<compile_context>
chip_gen: v5e
topology: v5e:2x2
jax: 0.10.0
libtpu: 0.0.40
codegen_flags: <defaults>
</compile_context>

<pallas_src>
import jax
import jax.numpy as jnp
from jax.experimental import pallas as pl
from jax.experimental.pallas import tpu as pltpu


EMB_DIM = 32      # fixed in the PyTorch module
OUT_PAD = 128     # lane-dense last-layer width (real columns = output_channel)


def _round_up(x, m):
    return (x + m - 1) // m * m


# ----------------------------- Pallas kernel -------------------------------
def _mlp_kernel(feat_ref, emb_ref, mask_ref, w1f_ref, w1e_ref, w2_ref,
                w3_ref, b_ref, out_ref):
    # masked feature (elementwise in f32 — v5e has no bf16 VPU).
    x = feat_ref[...] * mask_ref[...]                       # (tm, F) f32
    b = b_ref[...]                                          # (3, 128) f32

    # first block: K-split Linear(F + 2E -> H1) + ReLU.
    # bf16 operands -> single MXU pass per dot; f32 accumulation.
    h1 = jnp.dot(x.astype(jnp.bfloat16), w1f_ref[...],
                 preferred_element_type=jnp.float32)
    h1 = h1 + jnp.dot(emb_ref[...].astype(jnp.bfloat16), w1e_ref[...],
                      preferred_element_type=jnp.float32)
    h1 = jnp.maximum(h1 + b[0, :h1.shape[1]], 0.0)

    # mediate block: Linear(H1 -> H2) + ReLU
    h2 = jnp.dot(h1.astype(jnp.bfloat16), w2_ref[...],
                 preferred_element_type=jnp.float32)
    h2 = jnp.maximum(h2 + b[1, :h2.shape[1]], 0.0)

    # last layer: Linear(H2 -> 128); only the first out_ch columns are real,
    # padded weight/bias columns are zero so padded outputs are exactly 0.
    out = jnp.dot(h2.astype(jnp.bfloat16), w3_ref[...],
                  preferred_element_type=jnp.float32)
    out = out + b[2, :out.shape[1]]

    out_ref[...] = out.astype(out_ref.dtype)


# ----------------------- parameter-only precompute ---------------------------
def precompute_mask(mask_param, limit_feature_number):
    """sigmoid + top-k + scatter; depends only on parameters (hoisted out of
    the per-batch forward and cached per parameter update)."""
    mv = jax.nn.sigmoid(mask_param)
    vals, idx = jax.lax.top_k(mv, limit_feature_number)
    return jnp.zeros_like(mask_param).at[idx].set(vals)     # (F,)


# ------------------------------- wrapper ------------------------------------
def fcnet_embedding_mask_forward(params, mask_row, feature, additional, *,
                                 if_norm, block_m=512):
    """Returns (result, mask_vector) matching the PyTorch forward.

    mask_row is the precomputed (F,) top-k mask from precompute_mask().
    """
    B, F_ = feature.shape
    out_ch = params["b3"].shape[0]

    # embedding lookups (gather) — XLA glue, not the hot path.
    tissue_emb = jnp.take(params["tissue_emb"], additional["tissue_index"], axis=0)
    sex_emb = jnp.take(params["sex_emb"], additional["sex_index"], axis=0)
    emb = jnp.concatenate([tissue_emb, sex_emb], axis=1).astype(jnp.float32)  # (B, 2E)
    emb_w = emb.shape[1]

    feature = feature.astype(jnp.float32)

    # batch tiling: tm rows per grid step, weights VMEM-resident across steps.
    tm = min(block_m, _round_up(B, 8))
    Bp = _round_up(B, tm)
    if Bp != B:
        feature = jnp.pad(feature, ((0, Bp - B), (0, 0)))
        emb = jnp.pad(emb, ((0, Bp - B), (0, 0)))

    w1f, w1e, w2, w3p, b_all = (params["w1_feat_bf16"], params["w1_emb_bf16"],
                                params["w2_bf16"], params["w3_pad_bf16"],
                                params["b_all"])
    h1d, h2d = w1f.shape[1], w2.shape[1]
    hmax = b_all.shape[1]

    result_pad = pl.pallas_call(
        _mlp_kernel,
        out_shape=jax.ShapeDtypeStruct((Bp, OUT_PAD), jnp.float32),
        grid=(Bp // tm,),
        in_specs=[
            pl.BlockSpec((tm, F_), lambda i: (i, 0)),        # feature tile
            pl.BlockSpec((tm, emb_w), lambda i: (i, 0)),     # embedding tile
            pl.BlockSpec((1, F_), lambda i: (0, 0)),         # mask row (const)
            pl.BlockSpec((F_, h1d), lambda i: (0, 0)),       # w1[:F]   (const)
            pl.BlockSpec((emb_w, h1d), lambda i: (0, 0)),    # w1[F:]   (const)
            pl.BlockSpec((h1d, h2d), lambda i: (0, 0)),      # w2       (const)
            pl.BlockSpec((h2d, OUT_PAD), lambda i: (0, 0)),  # w3 (padded N)
            pl.BlockSpec((3, hmax), lambda i: (0, 0)),       # stacked biases
        ],
        out_specs=pl.BlockSpec((tm, OUT_PAD), lambda i: (i, 0)),
        compiler_params=pltpu.CompilerParams(
            dimension_semantics=("parallel",)),              # v7x 2-TC sharding
    )(feature, emb, mask_row[None, :], w1f, w1e, w2, w3p, b_all)

    result = result_pad[:B, :out_ch]

    if if_norm:
        # L1 norm is over the BATCH axis -> cannot live inside the
        # batch-parallel grid; tiny (B x out_ch) XLA epilogue instead.
        # TODO(synk): fuse as a second "arbitrary" reduction pass if this
        # epilogue ever shows up in profiles.
        result = result / jnp.sqrt(jnp.sum(jnp.abs(result), axis=0, keepdims=True))

    mask_vector = jnp.broadcast_to(mask_row[None, :], (B, F_))
    return result, mask_vector


# ------------------------- deterministic parameters --------------------------
def init_params(key, feature_channel, output_channel, hidden_list,
                emb_dim=EMB_DIM, out_pad=OUT_PAD):
    ks = jax.random.split(key, 12)

    def linear(kw, kb, fan_in, fan_out):
        bound = 1.0 / jnp.sqrt(fan_in)
        w = jax.random.uniform(kw, (fan_in, fan_out), jnp.float32, -bound, bound)
        b = jax.random.uniform(kb, (fan_out,), jnp.float32, -bound, bound)
        return w, b

    h1d, h2d = hidden_list
    in1 = feature_channel + 2 * emb_dim
    w1, b1 = linear(ks[0], ks[1], in1, h1d)
    w2, b2 = linear(ks[2], ks[3], h1d, h2d)
    w3, b3 = linear(ks[4], ks[5], h2d, output_channel)

    # lane-dense last-layer weight: zero-pad the N dim to out_pad columns.
    w3_pad = jnp.pad(w3, ((0, 0), (0, out_pad - output_channel)))

    # stack all biases into one (3, Hmax) array (fewer kernel refs).
    hmax = max(h1d, h2d, out_pad)
    def _padrow(v):
        return jnp.pad(v, (0, hmax - v.shape[0]))
    b_all = jnp.stack([_padrow(b1), _padrow(b2), _padrow(b3)])

    return {
        "mask": jax.random.normal(ks[6], (feature_channel,), jnp.float32),
        "tissue_emb": jax.random.normal(ks[7], (32, emb_dim), jnp.float32),
        "sex_emb": jax.random.normal(ks[8], (4, emb_dim), jnp.float32),
        # f32 originals (reference / training master copies)
        "w1": w1, "b1": b1,
        "w2": w2, "b2": b2,
        "w3": w3, "b3": b3,
        # kernel-side packed params: bf16 weights (K-split w1), f32 biases
        "w1_feat_bf16": w1[:feature_channel].astype(jnp.bfloat16),
        "w1_emb_bf16": w1[feature_channel:].astype(jnp.bfloat16),
        "w2_bf16": w2.astype(jnp.bfloat16),
        "w3_pad_bf16": w3_pad.astype(jnp.bfloat16),
        "b_all": b_all,
    }


# ------------------------------ reference (jnp, f32) -------------------------
def reference_forward(params, feature, additional, *, limit_feature_number, if_norm):
    mv = jax.nn.sigmoid(params["mask"])
    vals, idx = jax.lax.top_k(mv, limit_feature_number)
    mask_row = jnp.zeros_like(params["mask"]).at[idx].set(vals)
    mask_vector = jnp.broadcast_to(mask_row[None, :], feature.shape)
    masked = feature * mask_vector
    tissue_emb = jnp.take(params["tissue_emb"], additional["tissue_index"], axis=0)
    sex_emb = jnp.take(params["sex_emb"], additional["sex_index"], axis=0)
    x = jnp.concatenate([masked, tissue_emb, sex_emb], axis=1)
    h1 = jnp.maximum(x @ params["w1"] + params["b1"], 0.0)
    h2 = jnp.maximum(h1 @ params["w2"] + params["b2"], 0.0)
    out = h2 @ params["w3"] + params["b3"]
    if if_norm:
        out = out / jnp.sqrt(jnp.sum(jnp.abs(out), axis=0, keepdims=True))
    return out, mask_vector


# --------------------------------- main --------------------------------------
if __name__ == "__main__":
    B = 8
    FEATURE_CHANNEL = 256
    OUTPUT_CHANNEL = 16
    HIDDEN_LIST = [128, 128]
    LIMIT = 64
    IF_NORM = True

    key = jax.random.PRNGKey(0)
    kp, kf, kt, ks = jax.random.split(key, 4)

    params = init_params(kp, FEATURE_CHANNEL, OUTPUT_CHANNEL, HIDDEN_LIST)
    feature = jax.random.normal(kf, (B, FEATURE_CHANNEL), jnp.float32)
    additional = {
        "tissue_index": jax.random.randint(kt, (B,), 0, 32),
        "sex_index": jax.random.randint(ks, (B,), 0, 4),
    }

    # parameter-only: computed once per parameter update, reused across calls.
    mask_row = precompute_mask(params["mask"], LIMIT)

    result, mask_vector = fcnet_embedding_mask_forward(
        params, mask_row, feature, additional, if_norm=IF_NORM)
    jax.block_until_ready((result, mask_vector))

    ref_result, ref_mask = reference_forward(
        params, feature, additional,
        limit_feature_number=LIMIT, if_norm=IF_NORM)

    assert result.shape == (B, OUTPUT_CHANNEL)
    assert mask_vector.shape == feature.shape
    # bf16 matmul operands -> loosened tolerance vs f32 reference.
    assert jnp.allclose(result, ref_result, atol=2e-2, rtol=2e-2)
    assert jnp.allclose(mask_vector, ref_mask)
    assert not jnp.any(jnp.isnan(result))

    print("KERNEL_OK")
</pallas_src>

<mosaic_0001>
module attributes {stable_mosaic.version = 11 : i64} {
  func.func @_mlp_kernel(%arg0: i32, %arg1: memref<8x256xf32, #tpu.memory_space<vmem>>, %arg2: memref<8x64xf32, #tpu.memory_space<vmem>>, %arg3: memref<1x256xf32, #tpu.memory_space<vmem>>, %arg4: memref<256x128xbf16, #tpu.memory_space<vmem>>, %arg5: memref<64x128xbf16, #tpu.memory_space<vmem>>, %arg6: memref<128x128xbf16, #tpu.memory_space<vmem>>, %arg7: memref<128x128xbf16, #tpu.memory_space<vmem>>, %arg8: memref<3x128xf32, #tpu.memory_space<vmem>>, %arg9: memref<8x128xf32, #tpu.memory_space<vmem>>) attributes {dimension_semantics = [#tpu.dimension_semantics<parallel>], iteration_bounds = array<i64: 1>, scalar_prefetch = 0 : i64, scratch_operands = 0 : i64, tpu.core_type = #tpu.core_type<tc>, window_params = [{transform_indices = @transform_0, window_bounds = array<i64: 8, 256>}, {transform_indices = @transform_1, window_bounds = array<i64: 8, 64>}, {pipeline_mode = #tpu.pipeline_mode<synchronous>, transform_indices = @transform_2, window_bounds = array<i64: 1, 256>}, {pipeline_mode = #tpu.pipeline_mode<synchronous>, transform_indices = @transform_3, window_bounds = array<i64: 256, 128>}, {pipeline_mode = #tpu.pipeline_mode<synchronous>, transform_indices = @transform_4, window_bounds = array<i64: 64, 128>}, {pipeline_mode = #tpu.pipeline_mode<synchronous>, transform_indices = @transform_5, window_bounds = array<i64: 128, 128>}, {pipeline_mode = #tpu.pipeline_mode<synchronous>, transform_indices = @transform_6, window_bounds = array<i64: 128, 128>}, {pipeline_mode = #tpu.pipeline_mode<synchronous>, transform_indices = @transform_7, window_bounds = array<i64: 3, 128>}, {transform_indices = @transform_8, window_bounds = array<i64: 8, 128>}]} {
    %c0 = arith.constant 0 : index
    %c0_0 = arith.constant 0 : index
    %0 = vector.load %arg1[%c0, %c0_0] : memref<8x256xf32, #tpu.memory_space<vmem>>, vector<8x256xf32>
    %c0_1 = arith.constant 0 : index
    %c0_2 = arith.constant 0 : index
    %1 = vector.load %arg3[%c0_1, %c0_2] : memref<1x256xf32, #tpu.memory_space<vmem>>, vector<1x256xf32>
    %2 = vector.broadcast %1 : vector<1x256xf32> to vector<8x256xf32>
    %3 = arith.mulf %0, %2 : vector<8x256xf32>
    %c0_3 = arith.constant 0 : index
    %c0_4 = arith.constant 0 : index
    %4 = vector.load %arg8[%c0_3, %c0_4] : memref<3x128xf32, #tpu.memory_space<vmem>>, vector<3x128xf32>
    %5 = arith.truncf %3 : vector<8x256xf32> to vector<8x256xbf16>
    %c0_5 = arith.constant 0 : index
    %c0_6 = arith.constant 0 : index
    %6 = vector.load %arg4[%c0_5, %c0_6] : memref<256x128xbf16, #tpu.memory_space<vmem>>, vector<256x128xbf16>
    %cst = arith.constant dense<0.000000e+00> : vector<8x128xf32>
    %7 = tpu.matmul %5, %6, %cst {dimension_numbers = #tpu.dot_dimension_numbers<[1], [0], [0], [1], [0, 0, 1, 1], [], []>} : vector<8x256xbf16>, vector<256x128xbf16>, vector<8x128xf32> -> vector<8x128xf32>
    %c0_7 = arith.constant 0 : index
    %c0_8 = arith.constant 0 : index
    %8 = vector.load %arg2[%c0_7, %c0_8] : memref<8x64xf32, #tpu.memory_space<vmem>>, vector<8x64xf32>
    %9 = arith.truncf %8 : vector<8x64xf32> to vector<8x64xbf16>
    %c0_9 = arith.constant 0 : index
    %c0_10 = arith.constant 0 : index
    %10 = vector.load %arg5[%c0_9, %c0_10] : memref<64x128xbf16, #tpu.memory_space<vmem>>, vector<64x128xbf16>
    %cst_11 = arith.constant dense<0.000000e+00> : vector<8x128xf32>
    %11 = tpu.matmul %9, %10, %cst_11 {dimension_numbers = #tpu.dot_dimension_numbers<[1], [0], [0], [1], [0, 0, 1, 1], [], []>} : vector<8x64xbf16>, vector<64x128xbf16>, vector<8x128xf32> -> vector<8x128xf32>
    %12 = arith.addf %7, %11 : vector<8x128xf32>
    %13 = vector.extract_strided_slice %4 {offsets = [0, 0], sizes = [1, 128], strides = [1, 1]} : vector<3x128xf32> to vector<1x128xf32>
    %14 = vector.shape_cast %13 : vector<1x128xf32> to vector<128xf32>
    %15 = vector.shape_cast %14 : vector<128xf32> to vector<1x128xf32>
    %16 = vector.broadcast %15 : vector<1x128xf32> to vector<8x128xf32>
    %17 = arith.addf %12, %16 : vector<8x128xf32>
    %cst_12 = arith.constant 0.000000e+00 : f32
    %18 = vector.broadcast %cst_12 : f32 to vector<8x128xf32>
    %19 = arith.maximumf %17, %18 : vector<8x128xf32>
    %20 = arith.truncf %19 : vector<8x128xf32> to vector<8x128xbf16>
    %c0_13 = arith.constant 0 : index
    %c0_14 = arith.constant 0 : index
    %21 = vector.load %arg6[%c0_13, %c0_14] : memref<128x128xbf16, #tpu.memory_space<vmem>>, vector<128x128xbf16>
    %cst_15 = arith.constant dense<0.000000e+00> : vector<8x128xf32>
    %22 = tpu.matmul %20, %21, %cst_15 {dimension_numbers = #tpu.dot_dimension_numbers<[1], [0], [0], [1], [0, 0, 1, 1], [], []>} : vector<8x128xbf16>, vector<128x128xbf16>, vector<8x128xf32> -> vector<8x128xf32>
    %23 = vector.extract_strided_slice %4 {offsets = [1, 0], sizes = [1, 128], strides = [1, 1]} : vector<3x128xf32> to vector<1x128xf32>
    %24 = vector.shape_cast %23 : vector<1x128xf32> to vector<128xf32>
    %25 = vector.shape_cast %24 : vector<128xf32> to vector<1x128xf32>
    %26 = vector.broadcast %25 : vector<1x128xf32> to vector<8x128xf32>
    %27 = arith.addf %22, %26 : vector<8x128xf32>
    %cst_16 = arith.constant 0.000000e+00 : f32
    %28 = vector.broadcast %cst_16 : f32 to vector<8x128xf32>
    %29 = arith.maximumf %27, %28 : vector<8x128xf32>
    %30 = arith.truncf %29 : vector<8x128xf32> to vector<8x128xbf16>
    %c0_17 = arith.constant 0 : index
    %c0_18 = arith.constant 0 : index
    %31 = vector.load %arg7[%c0_17, %c0_18] : memref<128x128xbf16, #tpu.memory_space<vmem>>, vector<128x128xbf16>
    %cst_19 = arith.constant dense<0.000000e+00> : vector<8x128xf32>
    %32 = tpu.matmul %30, %31, %cst_19 {dimension_numbers = #tpu.dot_dimension_numbers<[1], [0], [0], [1], [0, 0, 1, 1], [], []>} : vector<8x128xbf16>, vector<128x128xbf16>, vector<8x128xf32> -> vector<8x128xf32>
    %33 = vector.extract_strided_slice %4 {offsets = [2, 0], sizes = [1, 128], strides = [1, 1]} : vector<3x128xf32> to vector<1x128xf32>
    %34 = vector.shape_cast %33 : vector<1x128xf32> to vector<128xf32>
    %35 = vector.shape_cast %34 : vector<128xf32> to vector<1x128xf32>
    %36 = vector.broadcast %35 : vector<1x128xf32> to vector<8x128xf32>
    %37 = arith.addf %32, %36 : vector<8x128xf32>
    %c0_20 = arith.constant 0 : index
    %c0_21 = arith.constant 0 : index
    %38 = vector.load %arg9[%c0_20, %c0_21] : memref<8x128xf32, #tpu.memory_space<vmem>>, vector<8x128xf32>
    tpu.vector_store %arg9[%c0_20, %c0_21], %37 {strides = array<i32>} : memref<8x128xf32, #tpu.memory_space<vmem>>, vector<8x128xf32>,
    return
  }
  func.func @transform_0(%arg0: i32) -> (i32, i32) {
    %c0_i32 = arith.constant 0 : i32
    %c0_i32_0 = arith.constant 0 : i32
    return %arg0, %c0_i32 : i32, i32
  }
  func.func @transform_1(%arg0: i32) -> (i32, i32) {
    %c0_i32 = arith.constant 0 : i32
    %c0_i32_0 = arith.constant 0 : i32
    return %arg0, %c0_i32 : i32, i32
  }
  func.func @transform_2(%arg0: i32) -> (i32, i32) {
    %c0_i32 = arith.constant 0 : i32
    %c0_i32_0 = arith.constant 0 : i32
    %c0_i32_1 = arith.constant 0 : i32
    return %c0_i32, %c0_i32_0 : i32, i32
  }
  func.func @transform_3(%arg0: i32) -> (i32, i32) {
    %c0_i32 = arith.constant 0 : i32
    %c0_i32_0 = arith.constant 0 : i32
    %c0_i32_1 = arith.constant 0 : i32
    return %c0_i32, %c0_i32_0 : i32, i32
  }
  func.func @transform_4(%arg0: i32) -> (i32, i32) {
    %c0_i32 = arith.constant 0 : i32
    %c0_i32_0 = arith.constant 0 : i32
    %c0_i32_1 = arith.constant 0 : i32
    return %c0_i32, %c0_i32_0 : i32, i32
  }
  func.func @transform_5(%arg0: i32) -> (i32, i32) {
    %c0_i32 = arith.constant 0 : i32
    %c0_i32_0 = arith.constant 0 : i32
    %c0_i32_1 = arith.constant 0 : i32
    return %c0_i32, %c0_i32_0 : i32, i32
  }
  func.func @transform_6(%arg0: i32) -> (i32, i32) {
    %c0_i32 = arith.constant 0 : i32
    %c0_i32_0 = arith.constant 0 : i32
    %c0_i32_1 = arith.constant 0 : i32
    return %c0_i32, %c0_i32_0 : i32, i32
  }
  func.func @transform_7(%arg0: i32) -> (i32, i32) {
    %c0_i32 = arith.constant 0 : i32
    %c0_i32_0 = arith.constant 0 : i32
    %c0_i32_1 = arith.constant 0 : i32
    return %c0_i32, %c0_i32_0 : i32, i32
  }
  func.func @transform_8(%arg0: i32) -> (i32, i32) {
    %c0_i32 = arith.constant 0 : i32
    %c0_i32_0 = arith.constant 0 : i32
    return %arg0, %c0_i32 : i32, i32
  }
}

</mosaic_0001>

<llo_original>
// kernel: tpu_custom_call.1
$region0: #{tpu_custom_call.1}
  #allocation0 [shape = 'u32[]', space=smem, size = 0x4, offset = 0x4, fixed_abs, tag = 'smem constant byte address 0x4 - core index']
  #allocation1 [shape = 'u32[72,128]{1,0:T(1,128)}', space=vmem, size = 0x9000, scoped, tag = 'internal scratch']
  %s0 = inlined_call_operand.hbm [shape: f32[8,256], index: 0, kind: input, shape index: {}]
  %s1 = inlined_call_operand.hbm [shape: f32[8,64], index: 1, kind: input, shape index: {}]
  %s2 = inlined_call_operand.hbm [shape: f32[1,256], index: 2, kind: input, shape index: {}]
  %s3 = inlined_call_operand.hbm [shape: bf16[256,128], index: 3, kind: input, shape index: {}]
  %s4 = inlined_call_operand.hbm [shape: bf16[64,128], index: 4, kind: input, shape index: {}]
  %s5 = inlined_call_operand.hbm [shape: bf16[128,128], index: 5, kind: input, shape index: {}]
  %s6 = inlined_call_operand.hbm [shape: bf16[128,128], index: 6, kind: input, shape index: {}]
  %s7 = inlined_call_operand.vmem [shape: f32[3,128], index: 7, kind: input, shape index: {}]
  %s8 = inlined_call_operand.hbm [shape: f32[8,128], index: 8, kind: output, shape index: {}]
  %s9 = sld [smem:[#allocation0]]
  $region70: #{tpu_custom_call.1} parent=0
    _
  %s11 = ssub.s32 1, %s9
  %s12 = scalar_select 0, %s11, %s9
  $region1: #{tpu_custom_call.1} parent=0
    #allocation2 [shape = 'u8[8192]{0}', space=vmem, size = 0x2000, scoped, tag = 'input window, operand 0, single buffered']
    #allocation3 [shape = 's32[1]{0}', space=sflag, size = 0x4, scoped, tag = 'scoped memory for tpu_custom_call.1']
    #allocation4 [shape = 's32[1]{0}', space=sflag, size = 0x4, scoped, tag = 'scoped memory for tpu_custom_call.1']
    #allocation5 [shape = 'u8[4096]{0}', space=vmem, size = 0x1000, scoped, tag = 'input window, operand 1, single buffered']
    #allocation6 [shape = 's32[1]{0}', space=sflag, size = 0x4, scoped, tag = 'scoped memory for tpu_custom_call.1']
    #allocation7 [shape = 'u8[1024]{0}', space=vmem, size = 0x400, scoped, tag = 'input window, operand 2, single buffered']
    #allocation8 [shape = 'u8[65536]{0}', space=vmem, size = 0x10000, scoped, tag = 'input window, operand 3, single buffered']
    #allocation9 [shape = 's32[1]{0}', space=sflag, size = 0x4, scoped, tag = 'scoped memory for tpu_custom_call.1']
    #allocation10 [shape = 'u8[16384]{0}', space=vmem, size = 0x4000, scoped, tag = 'input window, operand 4, single buffered']
    #allocation11 [shape = 'u8[32768]{0}', space=vmem, size = 0x8000, scoped, tag = 'input window, operand 5, single buffered']
    #allocation12 [shape = 's32[1]{0}', space=sflag, size = 0x4, scoped, tag = 'scoped memory for tpu_custom_call.1']
    #allocation13 [shape = 'u8[32768]{0}', space=vmem, size = 0x8000, scoped, tag = 'input window, operand 6, single buffered']
    #allocation14 [shape = 'u8[4096]{0}', space=vmem, size = 0x1000, scoped, tag = 'output window, operand 0, single buffered']
    %13 = vsyncpa [#allocation3], 0
    %14 = vsyncpa [#allocation6], 0
    %15 = vsyncpa [#allocation9], 0
    %16 = vsyncpa [#allocation12], 0
    %17 = vsyncpa [#allocation4], 0
    // Predicated region
    $region2: #{tpu_custom_call.1} parent=1 // pred_check
      _
    $region3: #{tpu_custom_call.1} parent=1 // pred_check_branch
      %19 = sbr.rel (0) target = $region5
    $region4: #{tpu_custom_call.1} parent=1 // pred_region
      %21 = vsyncadd [#allocation3], 0
      %s23 = sshll.u32 %s0, 4
      %s24 = int_to_ptr.hbm [resolvable:$true] %s23
      %s25 = sshll.u32 [#allocation2], 4
      %s26 = int_to_ptr.vmem [resolvable:$true] %s25
      %28 = dma.hbm_to_vmem [thread:$0]  %s24, 256, %s26, [#allocation3]
    $region5: #{tpu_custom_call.1} parent=1 // pred_fallthru
      _
    // Predicated region
    $region6: #{tpu_custom_call.1} parent=1 // pred_check
      _
    $region7: #{tpu_custom_call.1} parent=1 // pred_check_branch
      %30 = sbr.rel (0) target = $region9
    $region8: #{tpu_custom_call.1} parent=1 // pred_region
      %32 = vsyncadd [#allocation6], 0
      %s34 = sshll.u32 %s1, 4
      %s35 = int_to_ptr.hbm [resolvable:$true] %s34
      %s36 = sshll.u32 [#allocation5], 4
      %s37 = int_to_ptr.vmem [resolvable:$true] %s36
      %39 = dma.hbm_to_vmem [thread:$0]  %s35, 128, %s37, [#allocation6]
    $region9: #{tpu_custom_call.1} parent=1 // pred_fallthru
      _
    // Predicated region
    $region10: #{tpu_custom_call.1} parent=1 // pred_check
      _
    $region11: #{tpu_custom_call.1} parent=1 // pred_check_branch
      %41 = sbr.rel (0) target = $region13
    $region12: #{tpu_custom_call.1} parent=1 // pred_region
      %43 = vsyncadd [#allocation6], 0
      %s45 = sshll.u32 %s2, 4
      %s46 = int_to_ptr.hbm [resolvable:$true] %s45
      %s47 = sshll.u32 [#allocation7], 4
      %s48 = int_to_ptr.vmem [resolvable:$true] %s47
      %50 = dma.hbm_to_vmem [thread:$0]  %s46, 32, %s48, [#allocation6]
    $region13: #{tpu_custom_call.1} parent=1 // pred_fallthru
      _
    // Predicated region
    $region14: #{tpu_custom_call.1} parent=1 // pred_check
      _
    $region15: #{tpu_custom_call.1} parent=1 // pred_check_branch
      %52 = sbr.rel (0) target = $region17
    $region16: #{tpu_custom_call.1} parent=1 // pred_region
      %54 = vsyncadd [#allocation9], 0
      %s55 = sshll.u32 %s3, 4
      %s56 = int_to_ptr.hbm [resolvable:$true] %s55
      %s57 = sshll.u32 [#allocation8], 4
      %s58 = int_to_ptr.vmem [resolvable:$true] %s57
      %63 = dma.hbm_to_vmem [thread:$0]  %s56, 2048, %s58, [#allocation9], 64, 64, 4
    $region17: #{tpu_custom_call.1} parent=1 // pred_fallthru
      _
    // Predicated region
    $region18: #{tpu_custom_call.1} parent=1 // pred_check
      _
    $region19: #{tpu_custom_call.1} parent=1 // pred_check_branch
      %65 = sbr.rel (0) target = $region21
    $region20: #{tpu_custom_call.1} parent=1 // pred_region
      %67 = vsyncadd [#allocation9], 0
      %s68 = sshll.u32 %s4, 4
      %s69 = int_to_ptr.hbm [resolvable:$true] %s68
      %s70 = sshll.u32 [#allocation10], 4
      %s71 = int_to_ptr.vmem [resolvable:$true] %s70
      %76 = dma.hbm_to_vmem [thread:$0]  %s69, 512, %s71, [#allocation9], 64, 64, 4
    $region21: #{tpu_custom_call.1} parent=1 // pred_fallthru
      _
    // Predicated region
    $region22: #{tpu_custom_call.1} parent=1 // pred_check
      _
    $region23: #{tpu_custom_call.1} parent=1 // pred_check_branch
      %78 = sbr.rel (0) target = $region25
    $region24: #{tpu_custom_call.1} parent=1 // pred_region
      %80 = vsyncadd [#allocation12], 0
      %s81 = sshll.u32 %s5, 4
      %s82 = int_to_ptr.hbm [resolvable:$true] %s81
      %s83 = sshll.u32 [#allocation11], 4
      %s84 = int_to_ptr.vmem [resolvable:$true] %s83
      %89 = dma.hbm_to_vmem [thread:$0]  %s82, 1024, %s84, [#allocation12], 64, 64, 4
    $region25: #{tpu_custom_call.1} parent=1 // pred_fallthru
      _
    // Predicated region
    $region26: #{tpu_custom_call.1} parent=1 // pred_check
      _
    $region27: #{tpu_custom_call.1} parent=1 // pred_check_branch
      %91 = sbr.rel (0) target = $region29
    $region28: #{tpu_custom_call.1} parent=1 // pred_region
      %93 = vsyncadd [#allocation12], 0
      %s94 = sshll.u32 %s6, 4
      %s95 = int_to_ptr.hbm [resolvable:$true] %s94
      %s96 = sshll.u32 [#allocation13], 4
      %s97 = int_to_ptr.vmem [resolvable:$true] %s96
      %102 = dma.hbm_to_vmem [thread:$0]  %s95, 1024, %s97, [#allocation12], 64, 64, 4
    $region29: #{tpu_custom_call.1} parent=1 // pred_fallthru
      _
    // Predicated region
    $region30: #{tpu_custom_call.1} parent=1 // pred_check
      _
    $region31: #{tpu_custom_call.1} parent=1 // pred_check_branch
      %104 = sbr.rel (0) target = $region33
    $region32: #{tpu_custom_call.1} parent=1 // pred_region
      _
    $region33: #{tpu_custom_call.1} parent=1 // pred_fallthru
      _
    // Predicated region
    $region34: #{tpu_custom_call.1} parent=1 // pred_check
      _
    $region35: #{tpu_custom_call.1} parent=1 // pred_check_branch
      %106 = sbr.rel (0) target = $region37
    $region36: #{tpu_custom_call.1} parent=1 // pred_region
      %108 = dma.done [#allocation3], 256
    $region37: #{tpu_custom_call.1} parent=1 // pred_fallthru
      _
    // Predicated region
    $region38: #{tpu_custom_call.1} parent=1 // pred_check
      _
    $region39: #{tpu_custom_call.1} parent=1 // pred_check_branch
      %110 = sbr.rel (0) target = $region41
    $region40: #{tpu_custom_call.1} parent=1 // pred_region
      %112 = dma.done [#allocation6], 128
    $region41: #{tpu_custom_call.1} parent=1 // pred_fallthru
      _
    // Predicated region
    $region42: #{tpu_custom_call.1} parent=1 // pred_check
      _
    $region43: #{tpu_custom_call.1} parent=1 // pred_check_branch
      %114 = sbr.rel (0) target = $region45
    $region44: #{tpu_custom_call.1} parent=1 // pred_region
      %116 = dma.done [#allocation6], 32
    $region45: #{tpu_custom_call.1} parent=1 // pred_fallthru
      _
    // Predicated region
    $region46: #{tpu_custom_call.1} parent=1 // pred_check
      _
    $region47: #{tpu_custom_call.1} parent=1 // pred_check_branch
      %118 = sbr.rel (0) target = $region49
    $region48: #{tpu_custom_call.1} parent=1 // pred_region
      %120 = dma.done [#allocation9], 2048
    $region49: #{tpu_custom_call.1} parent=1 // pred_fallthru
      _
    // Predicated region
    $region50: #{tpu_custom_call.1} parent=1 // pred_check
      _
    $region51: #{tpu_custom_call.1} parent=1 // pred_check_branch
      %122 = sbr.rel (0) target = $region53
    $region52: #{tpu_custom_call.1} parent=1 // pred_region
      %124 = dma.done [#allocation9], 512
    $region53: #{tpu_custom_call.1} parent=1 // pred_fallthru
      _
    // Predicated region
    $region54: #{tpu_custom_call.1} parent=1 // pred_check
      _
    $region55: #{tpu_custom_call.1} parent=1 // pred_check_branch
      %126 = sbr.rel (0) target = $region57
    $region56: #{tpu_custom_call.1} parent=1 // pred_region
      %128 = dma.done [#allocation12], 1024
    $region57: #{tpu_custom_call.1} parent=1 // pred_fallthru
      _
    // Predicated region
    $region58: #{tpu_custom_call.1} parent=1 // pred_check
      _
    $region59: #{tpu_custom_call.1} parent=1 // pred_check_branch
      %130 = sbr.rel (0) target = $region61
    $region60: #{tpu_custom_call.1} parent=1 // pred_region
      %132 = dma.done [#allocation12], 1024
    $region61: #{tpu_custom_call.1} parent=1 // pred_fallthru
      _
    %v134 = vld [vmem:[#allocation2] sm:$0xff]
    %v135 = vld [vmem:[#allocation2 + $0x8] sm:$0xff]
    %v136 = vld [vmem:[#allocation7] sm:$0x3]
    %v138 = vperm.slane %v136, 0
    %v139 = vperm.slane %v136, 1
    %v142 = vmul.f32 %v134, %v138
    %v143 = vmul.f32 %v135, %v139
    %v144 = vld [vmem:[%s7] sm:$0x7]
    %v145 = vpack.c.bf16 %v142, %v142
    %v146 = vpack.c.bf16 %v143, %v143
    %v147 = vld [vmem:[#allocation8] sm:$0xf]
    %v148 = vld [vmem:[#allocation8 + $0x4] sm:$0xf]
    %v149 = vld [vmem:[#allocation8 + $0x8] sm:$0xf]
    %v150 = vld [vmem:[#allocation8 + $0xc] sm:$0xf]
    %v151 = vld [vmem:[#allocation8 + $0x10] sm:$0xf]
    %v152 = vld [vmem:[#allocation8 + $0x14] sm:$0xf]
    %v153 = vld [vmem:[#allocation8 + $0x18] sm:$0xf]
    %v154 = vld [vmem:[#allocation8 + $0x1c] sm:$0xf]
    %v155 = vld [vmem:[#allocation8 + $0x20] sm:$0xf]
    %v156 = vld [vmem:[#allocation8 + $0x24] sm:$0xf]
    %v157 = vld [vmem:[#allocation8 + $0x28] sm:$0xf]
    %v158 = vld [vmem:[#allocation8 + $0x2c] sm:$0xf]
    %v159 = vld [vmem:[#allocation8 + $0x30] sm:$0xf]
    %v160 = vld [vmem:[#allocation8 + $0x34] sm:$0xf]
    %v161 = vld [vmem:[#allocation8 + $0x38] sm:$0xf]
    %v162 = vld [vmem:[#allocation8 + $0x3c] sm:$0xf]
    %v163 = vld [vmem:[#allocation8 + $0x40] sm:$0xf]
    %v164 = vld [vmem:[#allocation8 + $0x44] sm:$0xf]
    %v165 = vld [vmem:[#allocation8 + $0x48] sm:$0xf]
    %v166 = vld [vmem:[#allocation8 + $0x4c] sm:$0xf]
    %v167 = vld [vmem:[#allocation8 + $0x50] sm:$0xf]
    %v168 = vld [vmem:[#allocation8 + $0x54] sm:$0xf]
    %v169 = vld [vmem:[#allocation8 + $0x58] sm:$0xf]
    %v170 = vld [vmem:[#allocation8 + $0x5c] sm:$0xf]
    %v171 = vld [vmem:[#allocation8 + $0x60] sm:$0xf]
    %v172 = vld [vmem:[#allocation8 + $0x64] sm:$0xf]
    %v173 = vld [vmem:[#allocation8 + $0x68] sm:$0xf]
    %v174 = vld [vmem:[#allocation8 + $0x6c] sm:$0xf]
    %v175 = vld [vmem:[#allocation8 + $0x70] sm:$0xf]
    %v176 = vld [vmem:[#allocation8 + $0x74] sm:$0xf]
    %v177 = vld [vmem:[#allocation8 + $0x78] sm:$0xf]
    %v178 = vld [vmem:[#allocation8 + $0x7c] sm:$0xf]
    %v179 = vld [vmem:[#allocation5] sm:$0xff]
    %v180 = vpack.c.bf16 %v179, %v179
    %v181 = vld [vmem:[#allocation10] sm:$0xf]
    %v182 = vld [vmem:[#allocation10 + $0x4] sm:$0xf]
    %v183 = vld [vmem:[#allocation10 + $0x8] sm:$0xf]
    %v184 = vld [vmem:[#allocation10 + $0xc] sm:$0xf]
    %v185 = vld [vmem:[#allocation10 + $0x10] sm:$0xf]
    %v186 = vld [vmem:[#allocation10 + $0x14] sm:$0xf]
    %v187 = vld [vmem:[#allocation10 + $0x18] sm:$0xf]
    %v188 = vld [vmem:[#allocation10 + $0x1c] sm:$0xf]
    %v197 = vunpack.c.l.b16 %v181
    %v198 = vunpack.c.l.b16 %v182
    %v199 = vunpack.c.l.b16 %v183
    %v200 = vunpack.c.l.b16 %v184
    %v201 = vunpack.c.l.b16 %v185
    %v202 = vunpack.c.l.b16 %v186
    %v203 = vunpack.c.l.b16 %v187
    %v204 = vunpack.c.l.b16 %v188
    %v205 = vpack.c.b16 %v198, %v197
    %v206 = vpack.c.b16 %v200, %v199
    %v207 = vpack.c.b16 %v202, %v201
    %v208 = vpack.c.b16 %v204, %v203
    %vm213 = vcmask 523264
    %v215 = vsel %vm213, %v180, 0
    %217 = vmatpush.bf16.msra.mxu0 0
    %218 = vmatpush.bf16.msra.mxu0 0
    %219 = vmatpush.bf16.msra.mxu0 0
    %220 = vmatpush.bf16.msra.mxu0 0
    %221 = vmatpush.bf16.msra.mxu0 %v208
    %222 = vmatpush.bf16.msra.mxu0 %v207
    %223 = vmatpush.bf16.msra.mxu0 %v206
    %224 = vmatpush.bf16.msra.mxu0 %v205
    %225 = vmatmul.bf16.gmra.mxu0 %v215
    %v226 = vpop.f32.mrf.mxu0
    %v227 = vadd.f32 0.0, %v226
    %v228 = vpop.f32.mrf.mxu0
    %229 = vdwg.mxu0
    %v262 = vunpack.c.l.b16 %v147
    %v263 = vunpack.c.l.b16 %v148
    %v264 = vunpack.c.l.b16 %v149
    %v265 = vunpack.c.l.b16 %v150
    %v266 = vunpack.c.l.b16 %v151
    %v267 = vunpack.c.l.b16 %v152
    %v268 = vunpack.c.l.b16 %v153
    %v269 = vunpack.c.l.b16 %v154
    %v270 = vunpack.c.l.b16 %v155
    %v271 = vunpack.c.l.b16 %v156
    %v272 = vunpack.c.l.b16 %v157
    %v273 = vunpack.c.l.b16 %v158
    %v274 = vunpack.c.l.b16 %v159
    %v275 = vunpack.c.l.b16 %v160
    %v276 = vunpack.c.l.b16 %v161
    %v277 = vunpack.c.l.b16 %v162
    %v278 = vunpack.c.l.b16 %v163
    %v279 = vunpack.c.l.b16 %v164
    %v280 = vunpack.c.l.b16 %v165
    %v281 = vunpack.c.l.b16 %v166
    %v282 = vunpack.c.l.b16 %v167
    %v283 = vunpack.c.l.b16 %v168
    %v284 = vunpack.c.l.b16 %v169
    %v285 = vunpack.c.l.b16 %v170
    %v286 = vunpack.c.l.b16 %v171
    %v287 = vunpack.c.l.b16 %v172
    %v288 = vunpack.c.l.b16 %v173
    %v289 = vunpack.c.l.b16 %v174
    %v290 = vunpack.c.l.b16 %v175
    %v291 = vunpack.c.l.b16 %v176
    %v292 = vunpack.c.l.b16 %v177
    %v293 = vunpack.c.l.b16 %v178
    %v294 = vpack.c.b16 %v263, %v262
    %v295 = vpack.c.b16 %v265, %v264
    %v296 = vpack.c.b16 %v267, %v266
    %v297 = vpack.c.b16 %v269, %v268
    %v298 = vpack.c.b16 %v271, %v270
    %v299 = vpack.c.b16 %v273, %v272
    %v300 = vpack.c.b16 %v275, %v274
    %v301 = vpack.c.b16 %v277, %v276
    %v302 = vpack.c.b16 %v279, %v278
    %v303 = vpack.c.b16 %v281, %v280
    %v304 = vpack.c.b16 %v283, %v282
    %v305 = vpack.c.b16 %v285, %v284
    %v306 = vpack.c.b16 %v287, %v286
    %v307 = vpack.c.b16 %v289, %v288
    %v308 = vpack.c.b16 %v291, %v290
    %v309 = vpack.c.b16 %v293, %v292
    %326 = vmatpush.bf16.msra.mxu0 %v301
    %327 = vmatpush.bf16.msra.mxu0 %v300
    %328 = vmatpush.bf16.msra.mxu0 %v299
    %329 = vmatpush.bf16.msra.mxu0 %v298
    %330 = vmatpush.bf16.msra.mxu0 %v297
    %331 = vmatpush.bf16.msra.mxu0 %v296
    %332 = vmatpush.bf16.msra.mxu0 %v295
    %333 = vmatpush.bf16.msra.mxu0 %v294
    %334 = vmatmul.bf16.gmra.mxu0 %v145
    %v335 = vpop.f32.mrf.mxu0
    %v336 = vadd.f32 %v227, %v335
    %v337 = vpop.f32.mrf.mxu0
    %338 = vdwg.mxu0
    %339 = vmatpush.bf16.msra.mxu0 %v309
    %340 = vmatpush.bf16.msra.mxu0 %v308
    %341 = vmatpush.bf16.msra.mxu0 %v307
    %342 = vmatpush.bf16.msra.mxu0 %v306
    %343 = vmatpush.bf16.msra.mxu0 %v305
    %344 = vmatpush.bf16.msra.mxu0 %v304
    %345 = vmatpush.bf16.msra.mxu0 %v303
    %346 = vmatpush.bf16.msra.mxu0 %v302
    %347 = vmatmul.bf16.gmra.mxu0 %v146
    %v348 = vpop.f32.mrf.mxu0
    %v349 = vadd.f32 %v336, %v348
    %v350 = vpop.f32.mrf.mxu0
    %351 = vdwg.mxu0
    %v352 = vperm.slane %v144, 0
    %v353 = vadd.f32 %v349, %v352
    %v354 = vmax.f32 %v353, 0.0
    %v355 = vpack.c.bf16 %v354, %v354
    %v356 = vld [vmem:[#allocation11] sm:$0xf]
    %v357 = vld [vmem:[#allocation11 + $0x4] sm:$0xf]
    %v358 = vld [vmem:[#allocation11 + $0x8] sm:$0xf]
    %v359 = vld [vmem:[#allocation11 + $0xc] sm:$0xf]
    %v360 = vld [vmem:[#allocation11 + $0x10] sm:$0xf]
    %v361 = vld [vmem:[#allocation11 + $0x14] sm:$0xf]
    %v362 = vld [vmem:[#allocation11 + $0x18] sm:$0xf]
    %v363 = vld [vmem:[#allocation11 + $0x1c] sm:$0xf]
    %v364 = vld [vmem:[#allocation11 + $0x20] sm:$0xf]
    %v365 = vld [vmem:[#allocation11 + $0x24] sm:$0xf]
    %v366 = vld [vmem:[#allocation11 + $0x28] sm:$0xf]
    %v367 = vld [vmem:[#allocation11 + $0x2c] sm:$0xf]
    %v368 = vld [vmem:[#allocation11 + $0x30] sm:$0xf]
    %v369 = vld [vmem:[#allocation11 + $0x34] sm:$0xf]
    %v370 = vld [vmem:[#allocation11 + $0x38] sm:$0xf]
    %v371 = vld [vmem:[#allocation11 + $0x3c] sm:$0xf]
    %v372 = vperm.slane %v144, 1
    %v389 = vunpack.c.l.b16 %v356
    %v390 = vunpack.c.l.b16 %v357
    %v391 = vunpack.c.l.b16 %v358
    %v392 = vunpack.c.l.b16 %v359
    %v393 = vunpack.c.l.b16 %v360
    %v394 = vunpack.c.l.b16 %v361
    %v395 = vunpack.c.l.b16 %v362
    %v396 = vunpack.c.l.b16 %v363
    %v397 = vunpack.c.l.b16 %v364
    %v398 = vunpack.c.l.b16 %v365
    %v399 = vunpack.c.l.b16 %v366
    %v400 = vunpack.c.l.b16 %v367
    %v401 = vunpack.c.l.b16 %v368
    %v402 = vunpack.c.l.b16 %v369
    %v403 = vunpack.c.l.b16 %v370
    %v404 = vunpack.c.l.b16 %v371
    %v405 = vpack.c.b16 %v390, %v389
    %v406 = vpack.c.b16 %v392, %v391
    %v407 = vpack.c.b16 %v394, %v393
    %v408 = vpack.c.b16 %v396, %v395
    %v409 = vpack.c.b16 %v398, %v397
    %v410 = vpack.c.b16 %v400, %v399
    %v411 = vpack.c.b16 %v402, %v401
    %v412 = vpack.c.b16 %v404, %v403
    %421 = vmatpush.bf16.msra.mxu0 %v412
    %422 = vmatpush.bf16.msra.mxu0 %v411
    %423 = vmatpush.bf16.msra.mxu0 %v410
    %424 = vmatpush.bf16.msra.mxu0 %v409
    %425 = vmatpush.bf16.msra.mxu0 %v408
    %426 = vmatpush.bf16.msra.mxu0 %v407
    %427 = vmatpush.bf16.msra.mxu0 %v406
    %428 = vmatpush.bf16.msra.mxu0 %v405
    %429 = vmatmul.bf16.gmra.mxu0 %v355
    %v430 = vpop.f32.mrf.mxu0
    %v431 = vadd.f32 %v372, %v430
    %v432 = vpop.f32.mrf.mxu0
    %433 = vdwg.mxu0
    %v434 = vmax.f32 %v431, 0.0
    %v435 = vpack.c.bf16 %v434, %v434
    %v436 = vld [vmem:[#allocation13] sm:$0xf]
    %v437 = vld [vmem:[#allocation13 + $0x4] sm:$0xf]
    %v438 = vld [vmem:[#allocation13 + $0x8] sm:$0xf]
    %v439 = vld [vmem:[#allocation13 + $0xc] sm:$0xf]
    %v440 = vld [vmem:[#allocation13 + $0x10] sm:$0xf]
    %v441 = vld [vmem:[#allocation13 + $0x14] sm:$0xf]
    %v442 = vld [vmem:[#allocation13 + $0x18] sm:$0xf]
    %v443 = vld [vmem:[#allocation13 + $0x1c] sm:$0xf]
    %v444 = vld [vmem:[#allocation13 + $0x20] sm:$0xf]
    %v445 = vld [vmem:[#allocation13 + $0x24] sm:$0xf]
    %v446 = vld [vmem:[#allocation13 + $0x28] sm:$0xf]
    %v447 = vld [vmem:[#allocation13 + $0x2c] sm:$0xf]
    %v448 = vld [vmem:[#allocation13 + $0x30] sm:$0xf]
    %v449 = vld [vmem:[#allocation13 + $0x34] sm:$0xf]
    %v450 = vld [vmem:[#allocation13 + $0x38] sm:$0xf]
    %v451 = vld [vmem:[#allocation13 + $0x3c] sm:$0xf]
    %v452 = vperm.slane %v144, 2
    %v469 = vunpack.c.l.b16 %v436
    %v470 = vunpack.c.l.b16 %v437
    %v471 = vunpack.c.l.b16 %v438
    %v472 = vunpack.c.l.b16 %v439
    %v473 = vunpack.c.l.b16 %v440
    %v474 = vunpack.c.l.b16 %v441
    %v475 = vunpack.c.l.b16 %v442
    %v476 = vunpack.c.l.b16 %v443
    %v477 = vunpack.c.l.b16 %v444
    %v478 = vunpack.c.l.b16 %v445
    %v479 = vunpack.c.l.b16 %v446
    %v480 = vunpack.c.l.b16 %v447
    %v481 = vunpack.c.l.b16 %v448
    %v482 = vunpack.c.l.b16 %v449
    %v483 = vunpack.c.l.b16 %v450
    %v484 = vunpack.c.l.b16 %v451
    %v485 = vpack.c.b16 %v470, %v469
    %v486 = vpack.c.b16 %v472, %v471
    %v487 = vpack.c.b16 %v474, %v473
    %v488 = vpack.c.b16 %v476, %v475
    %v489 = vpack.c.b16 %v478, %v477
    %v490 = vpack.c.b16 %v480, %v479
    %v491 = vpack.c.b16 %v482, %v481
    %v492 = vpack.c.b16 %v484, %v483
    %501 = vmatpush.bf16.msra.mxu0 %v492
    %502 = vmatpush.bf16.msra.mxu0 %v491
    %503 = vmatpush.bf16.msra.mxu0 %v490
    %504 = vmatpush.bf16.msra.mxu0 %v489
    %505 = vmatpush.bf16.msra.mxu0 %v488
    %506 = vmatpush.bf16.msra.mxu0 %v487
    %507 = vmatpush.bf16.msra.mxu0 %v486
    %508 = vmatpush.bf16.msra.mxu0 %v485
    %509 = vmatmul.bf16.gmra.mxu0 %v435
    %v510 = vpop.f32.mrf.mxu0
    %v511 = vadd.f32 %v452, %v510
    %v512 = vpop.f32.mrf.mxu0
    %513 = vdwg.mxu0
    %514 = vst [vmem:[#allocation14] sm:$0xff] %v511
    // Predicated region
    $region62: #{tpu_custom_call.1} parent=1 // pred_check
      _
    $region63: #{tpu_custom_call.1} parent=1 // pred_check_branch
      %516 = sbr.rel (0) target = $region65
    $region64: #{tpu_custom_call.1} parent=1 // pred_region
      %518 = vsyncadd [#allocation4], 0
      %s520 = sshll.u32 [#allocation14], 4
      %s521 = int_to_ptr.vmem [resolvable:$true] %s520
      %s522 = sshll.u32 %s8, 4
      %s523 = int_to_ptr.hbm [resolvable:$true] %s522
      %525 = dma.vmem_to_hbm [thread:$0]  %s521, 128, %s523, [#allocation4]
    $region65: #{tpu_custom_call.1} parent=1 // pred_fallthru
      _
    // Predicated region
    $region66: #{tpu_custom_call.1} parent=1 // pred_check
      _
    $region67: #{tpu_custom_call.1} parent=1 // pred_check_branch
      %527 = sbr.rel (0) target = $region69
    $region68: #{tpu_custom_call.1} parent=1 // pred_region
      %529 = dma.done [#allocation4], 128
    $region69: #{tpu_custom_call.1} parent=1 // pred_fallthru
      _
    %530 = vsyncpa [#allocation3], 1
    %531 = vsyncpa [#allocation6], 1
    %532 = vsyncpa [#allocation9], 1
    %533 = vsyncpa [#allocation12], 1
    %534 = vsyncpa [#allocation4], 1

</llo_original>
